<compile_context>
chip_gen: v7x
topology: tpu7x:2x2x1
jax: 0.10.0
libtpu: 0.0.40
codegen_flags: <defaults>
</compile_context>

<pallas_src>
import functools

import numpy as np
import jax
import jax.numpy as jnp
from jax.experimental import pallas as pl
from jax.experimental.pallas import tpu as pltpu

_MIB = 1024 * 1024


def _round_up(x, m):
    return (x + m - 1) // m * m


def _kernel_activation(z, activation):
    """Activation applied on f32 inside the kernel."""
    if activation is None or activation == "none":
        return z
    if activation == "relu":
        return jnp.maximum(z, 0.0)
    if activation == "tanh":
        return jnp.tanh(z)
    if activation == "sigmoid":
        # exp + approximate reciprocal both live on the EUP slot (cheap on all gens).
        return pl.reciprocal(1.0 + jnp.exp(-z), approx=True)
    raise ValueError(f"unsupported activation: {activation!r}")


def _ref_activation(z, activation):
    if activation is None or activation == "none":
        return z
    if activation == "relu":
        return jnp.maximum(z, 0.0)
    if activation == "tanh":
        return jnp.tanh(z)
    if activation == "sigmoid":
        return jax.nn.sigmoid(z)
    raise ValueError(f"unsupported activation: {activation!r}")


def _mlp_kernel(*refs, num_layers, activation, compute_dtype):
    # refs = (x_ref, w0, b0, w1, b1, ..., w_out, b_out, o_ref)
    x_ref = refs[0]
    o_ref = refs[-1]
    param_refs = refs[1:-1]

    # x arrives in its HBM dtype (f32); cast to the MXU input dtype here instead of
    # materializing a casted/padded copy of x in HBM wrapper-side.
    h = x_ref[...].astype(compute_dtype)
    for i in range(num_layers - 1):
        w = param_refs[2 * i][...]                    # (in_p, units_p), pre-transposed
        b = param_refs[2 * i + 1][...]                # (1, units_p), f32
        z = jnp.dot(h, w, preferred_element_type=jnp.float32) + b
        h = _kernel_activation(z, activation).astype(compute_dtype)
    w_out = param_refs[-2][...]                       # (units_p, output_dim)
    b_out = param_refs[-1][...]                       # (1, output_dim), f32
    out = jnp.dot(h, w_out, preferred_element_type=jnp.float32) + b_out
    o_ref[...] = out.astype(o_ref.dtype)


def prepare_mlp_params(params, *, compute_dtype=jnp.bfloat16):
    """Pad/transpose PyTorch nn.Linear-layout params ONCE (hoisted out of the
    per-call path).  `params` is a list of (weight (out,in), bias (out,)) pairs,
    the last pair being the output layer.  Per layer returns (w_t, b, (in_f, out_f)):
      * w_t is (in_padded, out_padded) in compute_dtype, zero-padded, pre-transposed,
      * the FIRST layer's in dim is left unpadded (matches the raw x width),
      * the LAST layer's out dim is left unpadded (logical-column stores),
      * hidden dims are padded to multiples of 128 (lane-dense MXU K/N).
    Zero padding is load-bearing: padded hidden lanes (even 0.5 under sigmoid) hit
    zero-padded K-rows of the next weight, so they never contaminate real outputs.
    """
    prepped = []
    num = len(params)
    for j, (w, b) in enumerate(params):
        w = jnp.asarray(w)
        b = jnp.asarray(b)
        out_f, in_f = int(w.shape[0]), int(w.shape[1])
        ip = in_f if j == 0 else _round_up(in_f, 128)
        op = out_f if j == num - 1 else _round_up(out_f, 128)
        w_t = jnp.zeros((ip, op), compute_dtype).at[:in_f, :out_f].set(
            w.T.astype(compute_dtype))
        b_p = jnp.zeros((1, op), jnp.float32).at[0, :out_f].set(b.astype(jnp.float32))
        prepped.append((w_t, b_p, (in_f, out_f)))
    return tuple(prepped)


def mlp_forward(x, prepared_params, *, input_dim, output_dim, activation="relu",
                row_tile=512):
    """Fused MLP forward.  `prepared_params` comes from prepare_mlp_params (call it
    once).  Returns (batch, -1, output_dim), matching the torch module's forward."""
    compute_dtype = prepared_params[0][0].dtype
    batch = x.shape[0]
    x2 = x.reshape(-1, input_dim)
    n = x2.shape[0]
    num_layers = len(prepared_params)
    assert int(prepared_params[0][0].shape[0]) == input_dim
    assert int(prepared_params[-1][0].shape[1]) == output_dim

    # ---- row tiling ---------------------------------------------------------------
    # bf16 packs 16 rows per sublane group; keep the tile a multiple of 16 there.
    mult = 16 if np.dtype(compute_dtype).itemsize < 4 else 8
    tile = min(row_tile, _round_up(max(n, 1), mult))
    # v7x has 2 TensorCores: make sure the parallel grid has >=2 steps for medium n.
    if n >= 256:
        tile = min(tile, _round_up(pl.cdiv(n, 2), mult))
    tile = max(mult, _round_up(tile, mult))
    grid = (pl.cdiv(n, tile),)  # partial last block: rows independent, OOB rows dropped.

    # ---- VMEM budget (weights single-buffered, x/out double-buffered) --------------
    c_item = np.dtype(compute_dtype).itemsize
    x_item = np.dtype(x.dtype).itemsize
    widest = max(int(w.shape[1]) for w, _, _ in prepared_params)
    vmem_est = 2 * tile * input_dim * x_item
    vmem_est += 2 * tile * output_dim * x_item
    for w, b, _ in prepared_params:
        vmem_est += int(w.size) * c_item + int(b.size) * 4
    vmem_est += 3 * tile * widest * 4                 # live f32 activation headroom

    vmem_limit = None
    if vmem_est > 12 * _MIB:
        try:
            vmem_cap = int(pltpu.get_tpu_info().vmem_capacity_bytes)
        except Exception:
            vmem_cap = 64 * _MIB                       # conservative (v7x per-TC size)
        # ~16 MiB headroom for Mosaic internal scratch; never above ~100 MiB even on
        # 128 MiB parts, never below 32 MiB.
        cap = max(32 * _MIB, min(vmem_cap - 16 * _MIB, 100 * _MIB))
        vmem_limit = int(min(max(vmem_est * 3 // 2, 32 * _MIB), cap))

    # ---- advisory cost estimate from LOGICAL (unpadded) dims ------------------------
    flops = 2 * n * sum(in_f * out_f for _, _, (in_f, out_f) in prepared_params)
    trans = 0
    if activation in ("tanh", "sigmoid"):
        trans = n * sum(out_f for _, _, (_, out_f) in prepared_params[:-1])
    bytes_accessed = (n * input_dim * x_item + n * output_dim * x_item
                      + sum(in_f * out_f * c_item + out_f * 4
                            for _, _, (in_f, out_f) in prepared_params))
    cost = pl.CostEstimate(flops=int(flops), transcendentals=int(trans),
                           bytes_accessed=int(bytes_accessed))

    kernel = functools.partial(_mlp_kernel, num_layers=num_layers,
                               activation=activation, compute_dtype=compute_dtype)

    def build_call(single_buffer_weights):
        in_specs = [pl.BlockSpec((tile, input_dim), lambda i: (i, 0))]
        flat = []
        for w, b, _ in prepared_params:
            flat += [w, b]
            if single_buffer_weights:
                # Constant index_map -> resident across the grid; single-buffer them.
                in_specs += [
                    pl.BlockSpec(w.shape, lambda i: (0, 0), pipeline_mode=pl.Buffered(1)),
                    pl.BlockSpec(b.shape, lambda i: (0, 0), pipeline_mode=pl.Buffered(1)),
                ]
            else:
                in_specs += [pl.BlockSpec(w.shape, lambda i: (0, 0)),
                             pl.BlockSpec(b.shape, lambda i: (0, 0))]
        out_spec = pl.BlockSpec((tile, output_dim), lambda i: (i, 0))
        call = pl.pallas_call(
            kernel,
            out_shape=jax.ShapeDtypeStruct((n, output_dim), x.dtype),
            grid=grid,
            in_specs=in_specs,
            out_specs=out_spec,
            compiler_params=pltpu.CompilerParams(
                dimension_semantics=("parallel",),
                vmem_limit_bytes=vmem_limit),
            cost_estimate=cost,
        )
        return call, flat

    call, flat = build_call(True)
    try:
        out2 = call(x2, *flat)
    except Exception:
        # pl.Buffered(1) not supported on this jax version -> default double-buffering.
        call, flat = build_call(False)
        out2 = call(x2, *flat)

    return out2.reshape(batch, -1, output_dim)


def init_mlp_params(key, input_dim, layers, units, output_dim):
    """Deterministic nn.Linear-style init: U(-1/sqrt(fan_in), 1/sqrt(fan_in))."""
    params = []
    dims_in = [input_dim] + [units] * (layers - 1) if layers > 0 else []
    for fan_in in dims_in:
        key, kw, kb = jax.random.split(key, 3)
        bound = 1.0 / jnp.sqrt(fan_in)
        w = jax.random.uniform(kw, (units, fan_in), jnp.float32, -bound, bound)
        b = jax.random.uniform(kb, (units,), jnp.float32, -bound, bound)
        params.append((w, b))
    fan_in = units if layers > 0 else input_dim
    key, kw, kb = jax.random.split(key, 3)
    bound = 1.0 / jnp.sqrt(fan_in)
    w = jax.random.uniform(kw, (output_dim, fan_in), jnp.float32, -bound, bound)
    b = jax.random.uniform(kb, (output_dim,), jnp.float32, -bound, bound)
    params.append((w, b))
    return params


def mlp_ref(x, params, *, input_dim, output_dim, activation="relu"):
    """Pure-JAX reference matching the torch module's forward."""
    h = x.reshape(-1, input_dim)
    for (w, b) in params[:-1]:
        h = _ref_activation(h @ w.T + b, activation)
    w, b = params[-1]
    out = h @ w.T + b
    return out.reshape(x.shape[0], -1, output_dim)


if __name__ == "__main__":
    # MLP(input_dim=16, layers=2, units=32, output_dim=8, activation=nn.ReLU())
    batch, seq = 2, 8
    input_dim, layers, units, output_dim = 16, 2, 32, 8
    activation = "relu"

    key = jax.random.PRNGKey(0)
    kx, kp = jax.random.split(key)
    x = jax.random.normal(kx, (batch, seq, input_dim), jnp.float32)
    params = init_mlp_params(kp, input_dim, layers, units, output_dim)

    expected = mlp_ref(x, params, input_dim=input_dim, output_dim=output_dim,
                       activation=activation)

    # f32 compute path (near-exact match vs reference)
    prepped_f32 = prepare_mlp_params(params, compute_dtype=jnp.float32)
    out = mlp_forward(x, prepped_f32, input_dim=input_dim, output_dim=output_dim,
                      activation=activation)
    out = jax.block_until_ready(out)
    assert out.shape == (batch, seq, output_dim), out.shape
    assert jnp.allclose(out, expected, atol=1e-4, rtol=1e-4), "f32 mismatch vs reference"

    # bf16 MXU-input path (f32 accumulation) — the default fast path
    prepped_bf16 = prepare_mlp_params(params, compute_dtype=jnp.bfloat16)
    out_bf16 = mlp_forward(x, prepped_bf16, input_dim=input_dim, output_dim=output_dim,
                           activation=activation)
    out_bf16 = jax.block_until_ready(out_bf16)
    assert out_bf16.shape == (batch, seq, output_dim), out_bf16.shape
    assert jnp.allclose(out_bf16, expected, atol=5e-2, rtol=5e-2), "bf16 mismatch vs reference"

    print("KERNEL_OK")
</pallas_src>

<mosaic_0001>
module attributes {stable_mosaic.version = 11 : i64} {
  func.func @_mlp_kernel(%arg0: i32, %arg1: memref<16x16xf32, #tpu.memory_space<vmem>>, %arg2: memref<16x128xf32, #tpu.memory_space<vmem>>, %arg3: memref<1x128xf32, #tpu.memory_space<vmem>>, %arg4: memref<128x128xf32, #tpu.memory_space<vmem>>, %arg5: memref<1x128xf32, #tpu.memory_space<vmem>>, %arg6: memref<128x8xf32, #tpu.memory_space<vmem>>, %arg7: memref<1x8xf32, #tpu.memory_space<vmem>>, %arg8: memref<16x8xf32, #tpu.memory_space<vmem>>) attributes {dimension_semantics = [#tpu.dimension_semantics<parallel>], iteration_bounds = array<i64: 1>, scalar_prefetch = 0 : i64, scratch_operands = 0 : i64, tpu.core_type = #tpu.core_type<tc>, window_params = [{transform_indices = @transform_0, window_bounds = array<i64: 16, 16>}, {pipeline_mode = #tpu.pipeline_mode<synchronous>, transform_indices = @transform_1, window_bounds = array<i64: 16, 128>}, {pipeline_mode = #tpu.pipeline_mode<synchronous>, transform_indices = @transform_2, window_bounds = array<i64: 1, 128>}, {pipeline_mode = #tpu.pipeline_mode<synchronous>, transform_indices = @transform_3, window_bounds = array<i64: 128, 128>}, {pipeline_mode = #tpu.pipeline_mode<synchronous>, transform_indices = @transform_4, window_bounds = array<i64: 1, 128>}, {pipeline_mode = #tpu.pipeline_mode<synchronous>, transform_indices = @transform_5, window_bounds = array<i64: 128, 8>}, {pipeline_mode = #tpu.pipeline_mode<synchronous>, transform_indices = @transform_6, window_bounds = array<i64: 1, 8>}, {transform_indices = @transform_7, window_bounds = array<i64: 16, 8>}]} {
    %c0 = arith.constant 0 : index
    %c0_0 = arith.constant 0 : index
    %0 = vector.load %arg1[%c0, %c0_0] : memref<16x16xf32, #tpu.memory_space<vmem>>, vector<16x16xf32>
    %c0_1 = arith.constant 0 : index
    %c0_2 = arith.constant 0 : index
    %1 = vector.load %arg2[%c0_1, %c0_2] : memref<16x128xf32, #tpu.memory_space<vmem>>, vector<16x128xf32>
    %c0_3 = arith.constant 0 : index
    %c0_4 = arith.constant 0 : index
    %2 = vector.load %arg3[%c0_3, %c0_4] : memref<1x128xf32, #tpu.memory_space<vmem>>, vector<1x128xf32>
    %cst = arith.constant dense<0.000000e+00> : vector<16x128xf32>
    %3 = tpu.matmul %0, %1, %cst {dimension_numbers = #tpu.dot_dimension_numbers<[1], [0], [0], [1], [0, 0, 1, 1], [], []>} : vector<16x16xf32>, vector<16x128xf32>, vector<16x128xf32> -> vector<16x128xf32>
    %4 = vector.broadcast %2 : vector<1x128xf32> to vector<16x128xf32>
    %5 = arith.addf %3, %4 : vector<16x128xf32>
    %cst_5 = arith.constant 0.000000e+00 : f32
    %6 = vector.broadcast %cst_5 : f32 to vector<16x128xf32>
    %7 = arith.maximumf %5, %6 : vector<16x128xf32>
    %c0_6 = arith.constant 0 : index
    %c0_7 = arith.constant 0 : index
    %8 = vector.load %arg4[%c0_6, %c0_7] : memref<128x128xf32, #tpu.memory_space<vmem>>, vector<128x128xf32>
    %c0_8 = arith.constant 0 : index
    %c0_9 = arith.constant 0 : index
    %9 = vector.load %arg5[%c0_8, %c0_9] : memref<1x128xf32, #tpu.memory_space<vmem>>, vector<1x128xf32>
    %cst_10 = arith.constant dense<0.000000e+00> : vector<16x128xf32>
    %10 = tpu.matmul %7, %8, %cst_10 {dimension_numbers = #tpu.dot_dimension_numbers<[1], [0], [0], [1], [0, 0, 1, 1], [], []>} : vector<16x128xf32>, vector<128x128xf32>, vector<16x128xf32> -> vector<16x128xf32>
    %11 = vector.broadcast %9 : vector<1x128xf32> to vector<16x128xf32>
    %12 = arith.addf %10, %11 : vector<16x128xf32>
    %cst_11 = arith.constant 0.000000e+00 : f32
    %13 = vector.broadcast %cst_11 : f32 to vector<16x128xf32>
    %14 = arith.maximumf %12, %13 : vector<16x128xf32>
    %c0_12 = arith.constant 0 : index
    %c0_13 = arith.constant 0 : index
    %15 = vector.load %arg6[%c0_12, %c0_13] : memref<128x8xf32, #tpu.memory_space<vmem>>, vector<128x8xf32>
    %c0_14 = arith.constant 0 : index
    %c0_15 = arith.constant 0 : index
    %16 = vector.load %arg7[%c0_14, %c0_15] : memref<1x8xf32, #tpu.memory_space<vmem>>, vector<1x8xf32>
    %cst_16 = arith.constant dense<0.000000e+00> : vector<16x8xf32>
    %17 = tpu.matmul %14, %15, %cst_16 {dimension_numbers = #tpu.dot_dimension_numbers<[1], [0], [0], [1], [0, 0, 1, 1], [], []>} : vector<16x128xf32>, vector<128x8xf32>, vector<16x8xf32> -> vector<16x8xf32>
    %18 = vector.broadcast %16 : vector<1x8xf32> to vector<16x8xf32>
    %19 = arith.addf %17, %18 : vector<16x8xf32>
    %c0_17 = arith.constant 0 : index
    %c0_18 = arith.constant 0 : index
    %20 = vector.load %arg8[%c0_17, %c0_18] : memref<16x8xf32, #tpu.memory_space<vmem>>, vector<16x8xf32>
    tpu.vector_store %arg8[%c0_17, %c0_18], %19 {strides = array<i32>} : memref<16x8xf32, #tpu.memory_space<vmem>>, vector<16x8xf32>,
    return
  }
  func.func @transform_0(%arg0: i32) -> (i32, i32) {
    %c0_i32 = arith.constant 0 : i32
    %c0_i32_0 = arith.constant 0 : i32
    return %arg0, %c0_i32 : i32, i32
  }
  func.func @transform_1(%arg0: i32) -> (i32, i32) {
    %c0_i32 = arith.constant 0 : i32
    %c0_i32_0 = arith.constant 0 : i32
    %c0_i32_1 = arith.constant 0 : i32
    return %c0_i32, %c0_i32_0 : i32, i32
  }
  func.func @transform_2(%arg0: i32) -> (i32, i32) {
    %c0_i32 = arith.constant 0 : i32
    %c0_i32_0 = arith.constant 0 : i32
    %c0_i32_1 = arith.constant 0 : i32
    return %c0_i32, %c0_i32_0 : i32, i32
  }
  func.func @transform_3(%arg0: i32) -> (i32, i32) {
    %c0_i32 = arith.constant 0 : i32
    %c0_i32_0 = arith.constant 0 : i32
    %c0_i32_1 = arith.constant 0 : i32
    return %c0_i32, %c0_i32_0 : i32, i32
  }
  func.func @transform_4(%arg0: i32) -> (i32, i32) {
    %c0_i32 = arith.constant 0 : i32
    %c0_i32_0 = arith.constant 0 : i32
    %c0_i32_1 = arith.constant 0 : i32
    return %c0_i32, %c0_i32_0 : i32, i32
  }
  func.func @transform_5(%arg0: i32) -> (i32, i32) {
    %c0_i32 = arith.constant 0 : i32
    %c0_i32_0 = arith.constant 0 : i32
    %c0_i32_1 = arith.constant 0 : i32
    return %c0_i32, %c0_i32_0 : i32, i32
  }
  func.func @transform_6(%arg0: i32) -> (i32, i32) {
    %c0_i32 = arith.constant 0 : i32
    %c0_i32_0 = arith.constant 0 : i32
    %c0_i32_1 = arith.constant 0 : i32
    return %c0_i32, %c0_i32_0 : i32, i32
  }
  func.func @transform_7(%arg0: i32) -> (i32, i32) {
    %c0_i32 = arith.constant 0 : i32
    %c0_i32_0 = arith.constant 0 : i32
    return %arg0, %c0_i32 : i32, i32
  }
}

module attributes {stable_mosaic.version = 11 : i64} {
  func.func @_mlp_kernel(%arg0: i32, %arg1: memref<16x16xf32, #tpu.memory_space<vmem>>, %arg2: memref<16x128xf32, #tpu.memory_space<vmem>>, %arg3: memref<1x128xf32, #tpu.memory_space<vmem>>, %arg4: memref<128x128xf32, #tpu.memory_space<vmem>>, %arg5: memref<1x128xf32, #tpu.memory_space<vmem>>, %arg6: memref<128x8xf32, #tpu.memory_space<vmem>>, %arg7: memref<1x8xf32, #tpu.memory_space<vmem>>, %arg8: memref<16x8xf32, #tpu.memory_space<vmem>>) attributes {dimension_semantics = [#tpu.dimension_semantics<parallel>], iteration_bounds = array<i64: 1>, scalar_prefetch = 0 : i64, scratch_operands = 0 : i64, tpu.core_type = #tpu.core_type<tc>, window_params = [{transform_indices = @transform_0, window_bounds = array<i64: 16, 16>}, {pipeline_mode = #tpu.pipeline_mode<synchronous>, transform_indices = @transform_1, window_bounds = array<i64: 16, 128>}, {pipeline_mode = #tpu.pipeline_mode<synchronous>, transform_indices = @transform_2, window_bounds = array<i64: 1, 128>}, {pipeline_mode = #tpu.pipeline_mode<synchronous>, transform_indices = @transform_3, window_bounds = array<i64: 128, 128>}, {pipeline_mode = #tpu.pipeline_mode<synchronous>, transform_indices = @transform_4, window_bounds = array<i64: 1, 128>}, {pipeline_mode = #tpu.pipeline_mode<synchronous>, transform_indices = @transform_5, window_bounds = array<i64: 128, 8>}, {pipeline_mode = #tpu.pipeline_mode<synchronous>, transform_indices = @transform_6, window_bounds = array<i64: 1, 8>}, {transform_indices = @transform_7, window_bounds = array<i64: 16, 8>}]} {
    %c0 = arith.constant 0 : index
    %c0_0 = arith.constant 0 : index
    %0 = vector.load %arg1[%c0, %c0_0] : memref<16x16xf32, #tpu.memory_space<vmem>>, vector<16x16xf32>
    %c0_1 = arith.constant 0 : index
    %c0_2 = arith.constant 0 : index
    %1 = vector.load %arg2[%c0_1, %c0_2] : memref<16x128xf32, #tpu.memory_space<vmem>>, vector<16x128xf32>
    %c0_3 = arith.constant 0 : index
    %c0_4 = arith.constant 0 : index
    %2 = vector.load %arg3[%c0_3, %c0_4] : memref<1x128xf32, #tpu.memory_space<vmem>>, vector<1x128xf32>
    %cst = arith.constant dense<0.000000e+00> : vector<16x128xf32>
    %3 = tpu.matmul %0, %1, %cst {dimension_numbers = #tpu.dot_dimension_numbers<[1], [0], [0], [1], [0, 0, 1, 1], [], []>} : vector<16x16xf32>, vector<16x128xf32>, vector<16x128xf32> -> vector<16x128xf32>
    %4 = vector.broadcast %2 : vector<1x128xf32> to vector<16x128xf32>
    %5 = arith.addf %3, %4 : vector<16x128xf32>
    %cst_5 = arith.constant 0.000000e+00 : f32
    %6 = vector.broadcast %cst_5 : f32 to vector<16x128xf32>
    %7 = arith.maximumf %5, %6 : vector<16x128xf32>
    %c0_6 = arith.constant 0 : index
    %c0_7 = arith.constant 0 : index
    %8 = vector.load %arg4[%c0_6, %c0_7] : memref<128x128xf32, #tpu.memory_space<vmem>>, vector<128x128xf32>
    %c0_8 = arith.constant 0 : index
    %c0_9 = arith.constant 0 : index
    %9 = vector.load %arg5[%c0_8, %c0_9] : memref<1x128xf32, #tpu.memory_space<vmem>>, vector<1x128xf32>
    %cst_10 = arith.constant dense<0.000000e+00> : vector<16x128xf32>
    %10 = tpu.matmul %7, %8, %cst_10 {dimension_numbers = #tpu.dot_dimension_numbers<[1], [0], [0], [1], [0, 0, 1, 1], [], []>} : vector<16x128xf32>, vector<128x128xf32>, vector<16x128xf32> -> vector<16x128xf32>
    %11 = vector.broadcast %9 : vector<1x128xf32> to vector<16x128xf32>
    %12 = arith.addf %10, %11 : vector<16x128xf32>
    %cst_11 = arith.constant 0.000000e+00 : f32
    %13 = vector.broadcast %cst_11 : f32 to vector<16x128xf32>
    %14 = arith.maximumf %12, %13 : vector<16x128xf32>
    %c0_12 = arith.constant 0 : index
    %c0_13 = arith.constant 0 : index
    %15 = vector.load %arg6[%c0_12, %c0_13] : memref<128x8xf32, #tpu.memory_space<vmem>>, vector<128x8xf32>
    %c0_14 = arith.constant 0 : index
    %c0_15 = arith.constant 0 : index
    %16 = vector.load %arg7[%c0_14, %c0_15] : memref<1x8xf32, #tpu.memory_space<vmem>>, vector<1x8xf32>
    %cst_16 = arith.constant dense<0.000000e+00> : vector<16x8xf32>
    %17 = tpu.matmul %14, %15, %cst_16 {dimension_numbers = #tpu.dot_dimension_numbers<[1], [0], [0], [1], [0, 0, 1, 1], [], []>} : vector<16x128xf32>, vector<128x8xf32>, vector<16x8xf32> -> vector<16x8xf32>
    %18 = vector.broadcast %16 : vector<1x8xf32> to vector<16x8xf32>
    %19 = arith.addf %17, %18 : vector<16x8xf32>
    %c0_17 = arith.constant 0 : index
    %c0_18 = arith.constant 0 : index
    %20 = vector.load %arg8[%c0_17, %c0_18] : memref<16x8xf32, #tpu.memory_space<vmem>>, vector<16x8xf32>
    tpu.vector_store %arg8[%c0_17, %c0_18], %19 {strides = array<i32>} : memref<16x8xf32, #tpu.memory_space<vmem>>, vector<16x8xf32>,
    return
  }
  func.func @transform_0(%arg0: i32) -> (i32, i32) {
    %c0_i32 = arith.constant 0 : i32
    %c0_i32_0 = arith.constant 0 : i32
    return %arg0, %c0_i32 : i32, i32
  }
  func.func @transform_1(%arg0: i32) -> (i32, i32) {
    %c0_i32 = arith.constant 0 : i32
    %c0_i32_0 = arith.constant 0 : i32
    %c0_i32_1 = arith.constant 0 : i32
    return %c0_i32, %c0_i32_0 : i32, i32
  }
  func.func @transform_2(%arg0: i32) -> (i32, i32) {
    %c0_i32 = arith.constant 0 : i32
    %c0_i32_0 = arith.constant 0 : i32
    %c0_i32_1 = arith.constant 0 : i32
    return %c0_i32, %c0_i32_0 : i32, i32
  }
  func.func @transform_3(%arg0: i32) -> (i32, i32) {
    %c0_i32 = arith.constant 0 : i32
    %c0_i32_0 = arith.constant 0 : i32
    %c0_i32_1 = arith.constant 0 : i32
    return %c0_i32, %c0_i32_0 : i32, i32
  }
  func.func @transform_4(%arg0: i32) -> (i32, i32) {
    %c0_i32 = arith.constant 0 : i32
    %c0_i32_0 = arith.constant 0 : i32
    %c0_i32_1 = arith.constant 0 : i32
    return %c0_i32, %c0_i32_0 : i32, i32
  }
  func.func @transform_5(%arg0: i32) -> (i32, i32) {
    %c0_i32 = arith.constant 0 : i32
    %c0_i32_0 = arith.constant 0 : i32
    %c0_i32_1 = arith.constant 0 : i32
    return %c0_i32, %c0_i32_0 : i32, i32
  }
  func.func @transform_6(%arg0: i32) -> (i32, i32) {
    %c0_i32 = arith.constant 0 : i32
    %c0_i32_0 = arith.constant 0 : i32
    %c0_i32_1 = arith.constant 0 : i32
    return %c0_i32, %c0_i32_0 : i32, i32
  }
  func.func @transform_7(%arg0: i32) -> (i32, i32) {
    %c0_i32 = arith.constant 0 : i32
    %c0_i32_0 = arith.constant 0 : i32
    return %arg0, %c0_i32 : i32, i32
  }
}

</mosaic_0001>

<llo_original>
// kernel: tpu_custom_call.1
$region0: #{tpu_custom_call.1}
  #allocation0 [shape = 'u32[]', space=smem, size = 0x4, offset = 0x4, fixed_abs, tag = 'smem constant byte address 0x4 - core index']
  #allocation1 [shape = 'u32[144,128]{1,0:T(1,128)}', space=vmem, size = 0x12000, scoped, tag = 'internal scratch']
  %s0 = inlined_call_operand.vmem [shape: f32[16,16], index: 0, kind: input, shape index: {}]
  %s1 = inlined_call_operand.hbm [shape: f32[16,128], index: 1, kind: input, shape index: {}]
  %s2 = inlined_call_operand.vmem [shape: f32[1,128], index: 2, kind: input, shape index: {}]
  %s3 = inlined_call_operand.vmem [shape: f32[128,128], index: 3, kind: input, shape index: {}]
  %s4 = inlined_call_operand.vmem [shape: f32[1,128], index: 4, kind: input, shape index: {}]
  %s5 = inlined_call_operand.vmem [shape: f32[128,8], index: 5, kind: input, shape index: {}]
  %s6 = inlined_call_operand.vmem [shape: f32[1,8], index: 6, kind: input, shape index: {}]
  %s7 = inlined_call_operand.vmem [shape: f32[16,8], index: 7, kind: output, shape index: {}]
  %s8 = sld [smem:[#allocation0]]
  $region42: #{tpu_custom_call.1} parent=0
    _
  %s10 = ssub.s32 1, %s8
  %s11 = scalar_select 0, %s10, %s8
  $region1: #{tpu_custom_call.1} parent=0
    #allocation2 [shape = 'u8[8192]{0}', space=vmem, size = 0x2000, scoped, tag = 'input window, operand 1, single buffered']
    #allocation3 [shape = 's32[1]{0}', space=sflag, size = 0x4, scoped, tag = 'scoped memory for tpu_custom_call.1']
    %12 = vsyncpa [#allocation3], 0
    // Predicated region
    $region2: #{tpu_custom_call.1} parent=1 // pred_check
      _
    $region3: #{tpu_custom_call.1} parent=1 // pred_check_branch
      %14 = sbr.rel (0) target = $region5
    $region4: #{tpu_custom_call.1} parent=1 // pred_region
      _
    $region5: #{tpu_custom_call.1} parent=1 // pred_fallthru
      _
    // Predicated region
    $region6: #{tpu_custom_call.1} parent=1 // pred_check
      _
    $region7: #{tpu_custom_call.1} parent=1 // pred_check_branch
      %16 = sbr.rel (0) target = $region9
    $region8: #{tpu_custom_call.1} parent=1 // pred_region
      %s18 = ssub.s32 256, 256
      %19 = vsyncadd [#allocation3], %s18
      %s20 = sshll.u32 [#allocation2], 4
      %s21 = int_to_ptr.vmem [resolvable:$true] %s20
      %26 = dma.hbm_to_vmem [thread:$0]  %s1, 256, %s21, [#allocation3], 128, 128, 8
    $region9: #{tpu_custom_call.1} parent=1 // pred_fallthru
      _
    // Predicated region
    $region10: #{tpu_custom_call.1} parent=1 // pred_check
      _
    $region11: #{tpu_custom_call.1} parent=1 // pred_check_branch
      %28 = sbr.rel (0) target = $region13
    $region12: #{tpu_custom_call.1} parent=1 // pred_region
      _
    $region13: #{tpu_custom_call.1} parent=1 // pred_fallthru
      _
    // Predicated region
    $region14: #{tpu_custom_call.1} parent=1 // pred_check
      _
    $region15: #{tpu_custom_call.1} parent=1 // pred_check_branch
      %30 = sbr.rel (0) target = $region17
    $region16: #{tpu_custom_call.1} parent=1 // pred_region
      _
    $region17: #{tpu_custom_call.1} parent=1 // pred_fallthru
      _
    // Predicated region
    $region18: #{tpu_custom_call.1} parent=1 // pred_check
      _
    $region19: #{tpu_custom_call.1} parent=1 // pred_check_branch
      %32 = sbr.rel (0) target = $region21
    $region20: #{tpu_custom_call.1} parent=1 // pred_region
      _
    $region21: #{tpu_custom_call.1} parent=1 // pred_fallthru
      _
    // Predicated region
    $region22: #{tpu_custom_call.1} parent=1 // pred_check
      _
    $region23: #{tpu_custom_call.1} parent=1 // pred_check_branch
      %34 = sbr.rel (0) target = $region25
    $region24: #{tpu_custom_call.1} parent=1 // pred_region
      _
    $region25: #{tpu_custom_call.1} parent=1 // pred_fallthru
      _
    // Predicated region
    $region26: #{tpu_custom_call.1} parent=1 // pred_check
      _
    $region27: #{tpu_custom_call.1} parent=1 // pred_check_branch
      %36 = sbr.rel (0) target = $region29
    $region28: #{tpu_custom_call.1} parent=1 // pred_region
      _
    $region29: #{tpu_custom_call.1} parent=1 // pred_fallthru
      _
    // Predicated region
    $region30: #{tpu_custom_call.1} parent=1 // pred_check
      _
    $region31: #{tpu_custom_call.1} parent=1 // pred_check_branch
      %38 = sbr.rel (0) target = $region33
    $region32: #{tpu_custom_call.1} parent=1 // pred_region
      %39 = dma.done [#allocation3], 256
    $region33: #{tpu_custom_call.1} parent=1 // pred_fallthru
      _
    %v40 = vld [vmem:[%s0] sm:$0xff]
    %v41 = vld [vmem:[%s0 + $0x8] sm:$0xff]
    %v42 = vld [vmem:[#allocation2] sm:$0xff]
    %v43 = vld [vmem:[#allocation2 + $0x8] sm:$0xff]
    %v44 = vld [vmem:[%s2] sm:$0x1]
    %v46 = vlaneseq
    %v47 = vshrl.u32 %v46, 7
    %v48 = vsub.s32 0, %v47
    %v49 = vrot.slane %v44, %v48
    %vm51 = vcmask 130048
    %v53 = vsel %vm51, %v40, 0
    %v56 = vsel %vm51, %v41, 0
    %58 = vmatprep.subr.mxu0 0.0
    %59 = vmatpush1.msra.mxu0 %v42
    %60 = vmatprep.subr.mxu0 0.0
    %61 = vmatpush1.msra.mxu0 %v43
    %62 = vmatprep.subr.mxu0 0.0
    %63 = vmatpush1.msra.mxu0 0.0
    %64 = vmatprep.subr.mxu0 0.0
    %65 = vmatpush1.msra.mxu0 0.0
    %66 = vmatprep.subr.mxu0 0.0
    %67 = vmatpush1.msra.mxu0 0.0
    %68 = vmatprep.subr.mxu0 0.0
    %69 = vmatpush1.msra.mxu0 0.0
    %70 = vmatprep.subr.mxu0 0.0
    %71 = vmatpush1.msra.mxu0 0.0
    %72 = vmatprep.subr.mxu0 0.0
    %73 = vmatpush1.msra.mxu0 0.0
    %74 = vmatprep.subr.mxu0 0.0
    %75 = vmatpush1.msra.mxu0 0.0
    %76 = vmatprep.subr.mxu0 0.0
    %77 = vmatpush1.msra.mxu0 0.0
    %78 = vmatprep.subr.mxu0 0.0
    %79 = vmatpush1.msra.mxu0 0.0
    %80 = vmatprep.subr.mxu0 0.0
    %81 = vmatpush1.msra.mxu0 0.0
    %82 = vmatprep.subr.mxu0 0.0
    %83 = vmatpush1.msra.mxu0 0.0
    %84 = vmatprep.subr.mxu0 0.0
    %85 = vmatpush1.msra.mxu0 0.0
    %86 = vmatprep.subr.mxu0 0.0
    %87 = vmatpush1.msra.mxu0 0.0
    %88 = vmatprep.subr.mxu0 0.0
    %89 = vmatpush1.msra.mxu0 0.0
    %90 = vmatprep.subr.mxu0 0.0
    %91 = vmatpush1.msra.mxu0 0.0
    %92 = vmatprep.subr.mxu0 0.0
    %93 = vmatpush1.msra.mxu0 0.0
    %94 = vmatprep.subr.mxu0 0.0
    %95 = vmatpush1.msra.mxu0 0.0
    %96 = vmatprep.subr.mxu0 0.0
    %97 = vmatpush1.msra.mxu0 0.0
    %98 = vmatprep.subr.mxu0 0.0
    %99 = vmatpush1.msra.mxu0 0.0
    %100 = vmatprep.subr.mxu0 0.0
    %101 = vmatpush1.msra.mxu0 0.0
    %102 = vmatprep.subr.mxu0 0.0
    %103 = vmatpush1.msra.mxu0 0.0
    %104 = vmatprep.subr.mxu0 0.0
    %105 = vmatpush1.msra.mxu0 0.0
    %106 = vmatprep.subr.mxu0 0.0
    %107 = vmatpush1.msra.mxu0 0.0
    %108 = vmatprep.subr.mxu0 0.0
    %109 = vmatpush1.msra.mxu0 0.0
    %110 = vmatprep.subr.mxu0 0.0
    %111 = vmatpush1.msra.mxu0 0.0
    %112 = vmatprep.subr.mxu0 0.0
    %113 = vmatpush1.msra.mxu0 0.0
    %114 = vmatprep.subr.mxu0 0.0
    %115 = vmatpush1.msra.mxu0 0.0
    %116 = vmatprep.subr.mxu0 0.0
    %117 = vmatpush1.msra.mxu0 0.0
    %118 = vmatprep.subr.mxu0 0.0
    %119 = vmatpush1.msra.mxu0 0.0
    %120 = vmatprep.subr.mxu0 0.0
    %121 = vmatpush1.msra.mxu0 0.0
    %122 = vmatprep.mubr.f32.mxu0 0.0
    %123 = vmatmul.mubr.f32.gmra.mrb[0].mxu0 %v53
    %v124 = vpop.f32.mrb[0].mxu0
    %v125 = vadd.f32 %v49, %v124
    %v126 = vpop.f32.mrb[0].mxu0
    %127 = vmatprep.mubr.f32.mxu0 0.0
    %128 = vmatmul.mubr.f32.gmra.mrb[0].mxu0 %v56
    %v129 = vpop.f32.mrb[0].mxu0
    %v130 = vadd.f32 %v49, %v129
    %v131 = vpop.f32.mrb[0].mxu0
    %132 = vdwg.mxu0
    %v133 = vmax.f32 %v125, 0.0
    %v134 = vmax.f32 %v130, 0.0
    %v135 = vld [vmem:[%s3] sm:$0xff]
    %v136 = vld [vmem:[%s3 + $0x8] sm:$0xff]
    %v137 = vld [vmem:[%s3 + $0x10] sm:$0xff]
    %v138 = vld [vmem:[%s3 + $0x18] sm:$0xff]
    %v139 = vld [vmem:[%s3 + $0x20] sm:$0xff]
    %v140 = vld [vmem:[%s3 + $0x28] sm:$0xff]
    %v141 = vld [vmem:[%s3 + $0x30] sm:$0xff]
    %v142 = vld [vmem:[%s3 + $0x38] sm:$0xff]
    %v143 = vld [vmem:[%s3 + $0x40] sm:$0xff]
    %v144 = vld [vmem:[%s3 + $0x48] sm:$0xff]
    %v145 = vld [vmem:[%s3 + $0x50] sm:$0xff]
    %v146 = vld [vmem:[%s3 + $0x58] sm:$0xff]
    %v147 = vld [vmem:[%s3 + $0x60] sm:$0xff]
    %v148 = vld [vmem:[%s3 + $0x68] sm:$0xff]
    %v149 = vld [vmem:[%s3 + $0x70] sm:$0xff]
    %v150 = vld [vmem:[%s3 + $0x78] sm:$0xff]
    %v151 = vld [vmem:[%s4] sm:$0x1]
    %v153 = vlaneseq
    %v154 = vshrl.u32 %v153, 7
    %v155 = vsub.s32 0, %v154
    %v156 = vrot.slane %v151, %v155
    %158 = vmatprep.subr.mxu0 0.0
    %159 = vmatpush1.msra.mxu0 %v135
    %160 = vmatprep.subr.mxu0 0.0
    %161 = vmatpush1.msra.mxu0 %v136
    %162 = vmatprep.subr.mxu0 0.0
    %163 = vmatpush1.msra.mxu0 %v137
    %164 = vmatprep.subr.mxu0 0.0
    %165 = vmatpush1.msra.mxu0 %v138
    %166 = vmatprep.subr.mxu0 0.0
    %167 = vmatpush1.msra.mxu0 %v139
    %168 = vmatprep.subr.mxu0 0.0
    %169 = vmatpush1.msra.mxu0 %v140
    %170 = vmatprep.subr.mxu0 0.0
    %171 = vmatpush1.msra.mxu0 %v141
    %172 = vmatprep.subr.mxu0 0.0
    %173 = vmatpush1.msra.mxu0 %v142
    %174 = vmatprep.subr.mxu0 0.0
    %175 = vmatpush1.msra.mxu0 %v143
    %176 = vmatprep.subr.mxu0 0.0
    %177 = vmatpush1.msra.mxu0 %v144
    %178 = vmatprep.subr.mxu0 0.0
    %179 = vmatpush1.msra.mxu0 %v145
    %180 = vmatprep.subr.mxu0 0.0
    %181 = vmatpush1.msra.mxu0 %v146
    %182 = vmatprep.subr.mxu0 0.0
    %183 = vmatpush1.msra.mxu0 %v147
    %184 = vmatprep.subr.mxu0 0.0
    %185 = vmatpush1.msra.mxu0 %v148
    %186 = vmatprep.subr.mxu0 0.0
    %187 = vmatpush1.msra.mxu0 %v149
    %188 = vmatprep.subr.mxu0 0.0
    %189 = vmatpush1.msra.mxu0 %v150
    %190 = vmatprep.subr.mxu0 0.0
    %191 = vmatpush1.msra.mxu0 0.0
    %192 = vmatprep.subr.mxu0 0.0
    %193 = vmatpush1.msra.mxu0 0.0
    %194 = vmatprep.subr.mxu0 0.0
    %195 = vmatpush1.msra.mxu0 0.0
    %196 = vmatprep.subr.mxu0 0.0
    %197 = vmatpush1.msra.mxu0 0.0
    %198 = vmatprep.subr.mxu0 0.0
    %199 = vmatpush1.msra.mxu0 0.0
    %200 = vmatprep.subr.mxu0 0.0
    %201 = vmatpush1.msra.mxu0 0.0
    %202 = vmatprep.subr.mxu0 0.0
    %203 = vmatpush1.msra.mxu0 0.0
    %204 = vmatprep.subr.mxu0 0.0
    %205 = vmatpush1.msra.mxu0 0.0
    %206 = vmatprep.subr.mxu0 0.0
    %207 = vmatpush1.msra.mxu0 0.0
    %208 = vmatprep.subr.mxu0 0.0
    %209 = vmatpush1.msra.mxu0 0.0
    %210 = vmatprep.subr.mxu0 0.0
    %211 = vmatpush1.msra.mxu0 0.0
    %212 = vmatprep.subr.mxu0 0.0
    %213 = vmatpush1.msra.mxu0 0.0
    %214 = vmatprep.subr.mxu0 0.0
    %215 = vmatpush1.msra.mxu0 0.0
    %216 = vmatprep.subr.mxu0 0.0
    %217 = vmatpush1.msra.mxu0 0.0
    %218 = vmatprep.subr.mxu0 0.0
    %219 = vmatpush1.msra.mxu0 0.0
    %220 = vmatprep.subr.mxu0 0.0
    %221 = vmatpush1.msra.mxu0 0.0
    %222 = vmatprep.mubr.f32.mxu0 0.0
    %223 = vmatmul.mubr.f32.gmra.mrb[0].mxu0 %v133
    %v224 = vpop.f32.mrb[0].mxu0
    %v225 = vadd.f32 %v156, %v224
    %v226 = vpop.f32.mrb[0].mxu0
    %227 = vmatprep.mubr.f32.mxu0 0.0
    %228 = vmatmul.mubr.f32.gmra.mrb[0].mxu0 %v134
    %v229 = vpop.f32.mrb[0].mxu0
    %v230 = vadd.f32 %v156, %v229
    %v231 = vpop.f32.mrb[0].mxu0
    %232 = vdwg.mxu0
    %v233 = vmax.f32 %v225, 0.0
    %v234 = vmax.f32 %v230, 0.0
    %v235 = vld [vmem:[%s5] sm:$0xff]
    %v236 = vld [vmem:[%s5 + $0x8] sm:$0xff]
    %v237 = vld [vmem:[%s5 + $0x10] sm:$0xff]
    %v238 = vld [vmem:[%s5 + $0x18] sm:$0xff]
    %v239 = vld [vmem:[%s5 + $0x20] sm:$0xff]
    %v240 = vld [vmem:[%s5 + $0x28] sm:$0xff]
    %v241 = vld [vmem:[%s5 + $0x30] sm:$0xff]
    %v242 = vld [vmem:[%s5 + $0x38] sm:$0xff]
    %v243 = vld [vmem:[%s5 + $0x40] sm:$0xff]
    %v244 = vld [vmem:[%s5 + $0x48] sm:$0xff]
    %v245 = vld [vmem:[%s5 + $0x50] sm:$0xff]
    %v246 = vld [vmem:[%s5 + $0x58] sm:$0xff]
    %v247 = vld [vmem:[%s5 + $0x60] sm:$0xff]
    %v248 = vld [vmem:[%s5 + $0x68] sm:$0xff]
    %v249 = vld [vmem:[%s5 + $0x70] sm:$0xff]
    %v250 = vld [vmem:[%s5 + $0x78] sm:$0xff]
    %v251 = vld [vmem:[%s6] sm:$0x1]
    %v253 = vlaneseq
    %v254 = vshrl.u32 %v253, 7
    %v255 = vsub.s32 0, %v254
    %v256 = vrot.slane %v251, %v255
    %258 = vmatprep.subr.mxu0 0.0
    %259 = vmatpush1.msra.mxu0 %v235
    %260 = vmatprep.subr.mxu0 0.0
    %261 = vmatpush1.msra.mxu0 %v236
    %262 = vmatprep.subr.mxu0 0.0
    %263 = vmatpush1.msra.mxu0 %v237
    %264 = vmatprep.subr.mxu0 0.0
    %265 = vmatpush1.msra.mxu0 %v238
    %266 = vmatprep.subr.mxu0 0.0
    %267 = vmatpush1.msra.mxu0 %v239
    %268 = vmatprep.subr.mxu0 0.0
    %269 = vmatpush1.msra.mxu0 %v240
    %270 = vmatprep.subr.mxu0 0.0
    %271 = vmatpush1.msra.mxu0 %v241
    %272 = vmatprep.subr.mxu0 0.0
    %273 = vmatpush1.msra.mxu0 %v242
    %274 = vmatprep.subr.mxu0 0.0
    %275 = vmatpush1.msra.mxu0 %v243
    %276 = vmatprep.subr.mxu0 0.0
    %277 = vmatpush1.msra.mxu0 %v244
    %278 = vmatprep.subr.mxu0 0.0
    %279 = vmatpush1.msra.mxu0 %v245
    %280 = vmatprep.subr.mxu0 0.0
    %281 = vmatpush1.msra.mxu0 %v246
    %282 = vmatprep.subr.mxu0 0.0
    %283 = vmatpush1.msra.mxu0 %v247
    %284 = vmatprep.subr.mxu0 0.0
    %285 = vmatpush1.msra.mxu0 %v248
    %286 = vmatprep.subr.mxu0 0.0
    %287 = vmatpush1.msra.mxu0 %v249
    %288 = vmatprep.subr.mxu0 0.0
    %289 = vmatpush1.msra.mxu0 %v250
    %290 = vmatprep.subr.mxu0 0.0
    %291 = vmatpush1.msra.mxu0 0.0
    %292 = vmatprep.subr.mxu0 0.0
    %293 = vmatpush1.msra.mxu0 0.0
    %294 = vmatprep.subr.mxu0 0.0
    %295 = vmatpush1.msra.mxu0 0.0
    %296 = vmatprep.subr.mxu0 0.0
    %297 = vmatpush1.msra.mxu0 0.0
    %298 = vmatprep.subr.mxu0 0.0
    %299 = vmatpush1.msra.mxu0 0.0
    %300 = vmatprep.subr.mxu0 0.0
    %301 = vmatpush1.msra.mxu0 0.0
    %302 = vmatprep.subr.mxu0 0.0
    %303 = vmatpush1.msra.mxu0 0.0
    %304 = vmatprep.subr.mxu0 0.0
    %305 = vmatpush1.msra.mxu0 0.0
    %306 = vmatprep.subr.mxu0 0.0
    %307 = vmatpush1.msra.mxu0 0.0
    %308 = vmatprep.subr.mxu0 0.0
    %309 = vmatpush1.msra.mxu0 0.0
    %310 = vmatprep.subr.mxu0 0.0
    %311 = vmatpush1.msra.mxu0 0.0
    %312 = vmatprep.subr.mxu0 0.0
    %313 = vmatpush1.msra.mxu0 0.0
    %314 = vmatprep.subr.mxu0 0.0
    %315 = vmatpush1.msra.mxu0 0.0
    %316 = vmatprep.subr.mxu0 0.0
    %317 = vmatpush1.msra.mxu0 0.0
    %318 = vmatprep.subr.mxu0 0.0
    %319 = vmatpush1.msra.mxu0 0.0
    %320 = vmatprep.subr.mxu0 0.0
    %321 = vmatpush1.msra.mxu0 0.0
    %322 = vmatprep.mubr.f32.mxu0 0.0
    %323 = vmatmul.mubr.f32.gmra.mrb[0].mxu0 %v233
    %v324 = vpop.f32.mrb[0].mxu0
    %v325 = vadd.f32 %v256, %v324
    %v326 = vpop.f32.mrb[0].mxu0
    %327 = vmatprep.mubr.f32.mxu0 0.0
    %328 = vmatmul.mubr.f32.gmra.mrb[0].mxu0 %v234
    %v329 = vpop.f32.mrb[0].mxu0
    %v330 = vadd.f32 %v256, %v329
    %v331 = vpop.f32.mrb[0].mxu0
    %332 = vdwg.mxu0
    %vm333 = vcmask 64512
    %334 = vst.msk [vmem:[%s7] sm:$0xff] %vm333, %v325
    %335 = vst.msk [vmem:[%s7 + $0x8] sm:$0xff] %vm333, %v330
    // Predicated region
    $region34: #{tpu_custom_call.1} parent=1 // pred_check
      _
    $region35: #{tpu_custom_call.1} parent=1 // pred_check_branch
      %337 = sbr.rel (0) target = $region37
    $region36: #{tpu_custom_call.1} parent=1 // pred_region
      _
    $region37: #{tpu_custom_call.1} parent=1 // pred_fallthru
      _
    // Predicated region
    $region38: #{tpu_custom_call.1} parent=1 // pred_check
      _
    $region39: #{tpu_custom_call.1} parent=1 // pred_check_branch
      %339 = sbr.rel (0) target = $region41
    $region40: #{tpu_custom_call.1} parent=1 // pred_region
      _
    $region41: #{tpu_custom_call.1} parent=1 // pred_fallthru
      _
    %340 = vsyncpa [#allocation3], 1

// kernel: tpu_custom_call.1
$region0: #{tpu_custom_call.1}
  #allocation0 [shape = 'u32[]', space=smem, size = 0x4, offset = 0x4, fixed_abs, tag = 'smem constant byte address 0x4 - core index']
  #allocation1 [shape = 'u32[144,128]{1,0:T(1,128)}', space=vmem, size = 0x12000, scoped, tag = 'internal scratch']
  %s0 = inlined_call_operand.vmem [shape: f32[16,16], index: 0, kind: input, shape index: {}]
  %s1 = inlined_call_operand.hbm [shape: f32[16,128], index: 1, kind: input, shape index: {}]
  %s2 = inlined_call_operand.vmem [shape: f32[1,128], index: 2, kind: input, shape index: {}]
  %s3 = inlined_call_operand.vmem [shape: f32[128,128], index: 3, kind: input, shape index: {}]
  %s4 = inlined_call_operand.vmem [shape: f32[1,128], index: 4, kind: input, shape index: {}]
  %s5 = inlined_call_operand.vmem [shape: f32[128,8], index: 5, kind: input, shape index: {}]
  %s6 = inlined_call_operand.vmem [shape: f32[1,8], index: 6, kind: input, shape index: {}]
  %s7 = inlined_call_operand.vmem [shape: f32[16,8], index: 7, kind: output, shape index: {}]
  %s8 = sld [smem:[#allocation0]]
  $region42: #{tpu_custom_call.1} parent=0
    _
  %s10 = ssub.s32 1, %s8
  %s11 = scalar_select 0, %s10, %s8
  $region1: #{tpu_custom_call.1} parent=0
    #allocation2 [shape = 'u8[8192]{0}', space=vmem, size = 0x2000, scoped, tag = 'input window, operand 1, single buffered']
    #allocation3 [shape = 's32[1]{0}', space=sflag, size = 0x4, scoped, tag = 'scoped memory for tpu_custom_call.1']
    %12 = vsyncpa [#allocation3], 0
    // Predicated region
    $region2: #{tpu_custom_call.1} parent=1 // pred_check
      _
    $region3: #{tpu_custom_call.1} parent=1 // pred_check_branch
      %14 = sbr.rel (0) target = $region5
    $region4: #{tpu_custom_call.1} parent=1 // pred_region
      _
    $region5: #{tpu_custom_call.1} parent=1 // pred_fallthru
      _
    // Predicated region
    $region6: #{tpu_custom_call.1} parent=1 // pred_check
      _
    $region7: #{tpu_custom_call.1} parent=1 // pred_check_branch
      %16 = sbr.rel (0) target = $region9
    $region8: #{tpu_custom_call.1} parent=1 // pred_region
      %s18 = ssub.s32 256, 256
      %19 = vsyncadd [#allocation3], %s18
      %s20 = sshll.u32 [#allocation2], 4
      %s21 = int_to_ptr.vmem [resolvable:$true] %s20
      %26 = dma.hbm_to_vmem [thread:$0]  %s1, 256, %s21, [#allocation3], 128, 128, 8
    $region9: #{tpu_custom_call.1} parent=1 // pred_fallthru
      _
    // Predicated region
    $region10: #{tpu_custom_call.1} parent=1 // pred_check
      _
    $region11: #{tpu_custom_call.1} parent=1 // pred_check_branch
      %28 = sbr.rel (0) target = $region13
    $region12: #{tpu_custom_call.1} parent=1 // pred_region
      _
    $region13: #{tpu_custom_call.1} parent=1 // pred_fallthru
      _
    // Predicated region
    $region14: #{tpu_custom_call.1} parent=1 // pred_check
      _
    $region15: #{tpu_custom_call.1} parent=1 // pred_check_branch
      %30 = sbr.rel (0) target = $region17
    $region16: #{tpu_custom_call.1} parent=1 // pred_region
      _
    $region17: #{tpu_custom_call.1} parent=1 // pred_fallthru
      _
    // Predicated region
    $region18: #{tpu_custom_call.1} parent=1 // pred_check
      _
    $region19: #{tpu_custom_call.1} parent=1 // pred_check_branch
      %32 = sbr.rel (0) target = $region21
    $region20: #{tpu_custom_call.1} parent=1 // pred_region
      _
    $region21: #{tpu_custom_call.1} parent=1 // pred_fallthru
      _
    // Predicated region
    $region22: #{tpu_custom_call.1} parent=1 // pred_check
      _
    $region23: #{tpu_custom_call.1} parent=1 // pred_check_branch
      %34 = sbr.rel (0) target = $region25
    $region24: #{tpu_custom_call.1} parent=1 // pred_region
      _
    $region25: #{tpu_custom_call.1} parent=1 // pred_fallthru
      _
    // Predicated region
    $region26: #{tpu_custom_call.1} parent=1 // pred_check
      _
    $region27: #{tpu_custom_call.1} parent=1 // pred_check_branch
      %36 = sbr.rel (0) target = $region29
    $region28: #{tpu_custom_call.1} parent=1 // pred_region
      _
    $region29: #{tpu_custom_call.1} parent=1 // pred_fallthru
      _
    // Predicated region
    $region30: #{tpu_custom_call.1} parent=1 // pred_check
      _
    $region31: #{tpu_custom_call.1} parent=1 // pred_check_branch
      %38 = sbr.rel (0) target = $region33
    $region32: #{tpu_custom_call.1} parent=1 // pred_region
      %39 = dma.done [#allocation3], 256
    $region33: #{tpu_custom_call.1} parent=1 // pred_fallthru
      _
    %v40 = vld [vmem:[%s0] sm:$0xff]
    %v41 = vld [vmem:[%s0 + $0x8] sm:$0xff]
    %v42 = vld [vmem:[#allocation2] sm:$0xff]
    %v43 = vld [vmem:[#allocation2 + $0x8] sm:$0xff]
    %v44 = vld [vmem:[%s2] sm:$0x1]
    %v46 = vlaneseq
    %v47 = vshrl.u32 %v46, 7
    %v48 = vsub.s32 0, %v47
    %v49 = vrot.slane %v44, %v48
    %vm51 = vcmask 130048
    %v53 = vsel %vm51, %v40, 0
    %v56 = vsel %vm51, %v41, 0
    %58 = vmatprep.subr.mxu0 0.0
    %59 = vmatpush1.msra.mxu0 %v42
    %60 = vmatprep.subr.mxu0 0.0
    %61 = vmatpush1.msra.mxu0 %v43
    %62 = vmatprep.subr.mxu0 0.0
    %63 = vmatpush1.msra.mxu0 0.0
    %64 = vmatprep.subr.mxu0 0.0
    %65 = vmatpush1.msra.mxu0 0.0
    %66 = vmatprep.subr.mxu0 0.0
    %67 = vmatpush1.msra.mxu0 0.0
    %68 = vmatprep.subr.mxu0 0.0
    %69 = vmatpush1.msra.mxu0 0.0
    %70 = vmatprep.subr.mxu0 0.0
    %71 = vmatpush1.msra.mxu0 0.0
    %72 = vmatprep.subr.mxu0 0.0
    %73 = vmatpush1.msra.mxu0 0.0
    %74 = vmatprep.subr.mxu0 0.0
    %75 = vmatpush1.msra.mxu0 0.0
    %76 = vmatprep.subr.mxu0 0.0
    %77 = vmatpush1.msra.mxu0 0.0
    %78 = vmatprep.subr.mxu0 0.0
    %79 = vmatpush1.msra.mxu0 0.0
    %80 = vmatprep.subr.mxu0 0.0
    %81 = vmatpush1.msra.mxu0 0.0
    %82 = vmatprep.subr.mxu0 0.0
    %83 = vmatpush1.msra.mxu0 0.0
    %84 = vmatprep.subr.mxu0 0.0
    %85 = vmatpush1.msra.mxu0 0.0
    %86 = vmatprep.subr.mxu0 0.0
    %87 = vmatpush1.msra.mxu0 0.0
    %88 = vmatprep.subr.mxu0 0.0
    %89 = vmatpush1.msra.mxu0 0.0
    %90 = vmatprep.subr.mxu0 0.0
    %91 = vmatpush1.msra.mxu0 0.0
    %92 = vmatprep.subr.mxu0 0.0
    %93 = vmatpush1.msra.mxu0 0.0
    %94 = vmatprep.subr.mxu0 0.0
    %95 = vmatpush1.msra.mxu0 0.0
    %96 = vmatprep.subr.mxu0 0.0
    %97 = vmatpush1.msra.mxu0 0.0
    %98 = vmatprep.subr.mxu0 0.0
    %99 = vmatpush1.msra.mxu0 0.0
    %100 = vmatprep.subr.mxu0 0.0
    %101 = vmatpush1.msra.mxu0 0.0
    %102 = vmatprep.subr.mxu0 0.0
    %103 = vmatpush1.msra.mxu0 0.0
    %104 = vmatprep.subr.mxu0 0.0
    %105 = vmatpush1.msra.mxu0 0.0
    %106 = vmatprep.subr.mxu0 0.0
    %107 = vmatpush1.msra.mxu0 0.0
    %108 = vmatprep.subr.mxu0 0.0
    %109 = vmatpush1.msra.mxu0 0.0
    %110 = vmatprep.subr.mxu0 0.0
    %111 = vmatpush1.msra.mxu0 0.0
    %112 = vmatprep.subr.mxu0 0.0
    %113 = vmatpush1.msra.mxu0 0.0
    %114 = vmatprep.subr.mxu0 0.0
    %115 = vmatpush1.msra.mxu0 0.0
    %116 = vmatprep.subr.mxu0 0.0
    %117 = vmatpush1.msra.mxu0 0.0
    %118 = vmatprep.subr.mxu0 0.0
    %119 = vmatpush1.msra.mxu0 0.0
    %120 = vmatprep.subr.mxu0 0.0
    %121 = vmatpush1.msra.mxu0 0.0
    %122 = vmatprep.mubr.f32.mxu0 0.0
    %123 = vmatmul.mubr.f32.gmra.mrb[0].mxu0 %v53
    %v124 = vpop.f32.mrb[0].mxu0
    %v125 = vadd.f32 %v49, %v124
    %v126 = vpop.f32.mrb[0].mxu0
    %127 = vmatprep.mubr.f32.mxu0 0.0
    %128 = vmatmul.mubr.f32.gmra.mrb[0].mxu0 %v56
    %v129 = vpop.f32.mrb[0].mxu0
    %v130 = vadd.f32 %v49, %v129
    %v131 = vpop.f32.mrb[0].mxu0
    %132 = vdwg.mxu0
    %v133 = vmax.f32 %v125, 0.0
    %v134 = vmax.f32 %v130, 0.0
    %v135 = vld [vmem:[%s3] sm:$0xff]
    %v136 = vld [vmem:[%s3 + $0x8] sm:$0xff]
    %v137 = vld [vmem:[%s3 + $0x10] sm:$0xff]
    %v138 = vld [vmem:[%s3 + $0x18] sm:$0xff]
    %v139 = vld [vmem:[%s3 + $0x20] sm:$0xff]
    %v140 = vld [vmem:[%s3 + $0x28] sm:$0xff]
    %v141 = vld [vmem:[%s3 + $0x30] sm:$0xff]
    %v142 = vld [vmem:[%s3 + $0x38] sm:$0xff]
    %v143 = vld [vmem:[%s3 + $0x40] sm:$0xff]
    %v144 = vld [vmem:[%s3 + $0x48] sm:$0xff]
    %v145 = vld [vmem:[%s3 + $0x50] sm:$0xff]
    %v146 = vld [vmem:[%s3 + $0x58] sm:$0xff]
    %v147 = vld [vmem:[%s3 + $0x60] sm:$0xff]
    %v148 = vld [vmem:[%s3 + $0x68] sm:$0xff]
    %v149 = vld [vmem:[%s3 + $0x70] sm:$0xff]
    %v150 = vld [vmem:[%s3 + $0x78] sm:$0xff]
    %v151 = vld [vmem:[%s4] sm:$0x1]
    %v153 = vlaneseq
    %v154 = vshrl.u32 %v153, 7
    %v155 = vsub.s32 0, %v154
    %v156 = vrot.slane %v151, %v155
    %158 = vmatprep.subr.mxu0 0.0
    %159 = vmatpush1.msra.mxu0 %v135
    %160 = vmatprep.subr.mxu0 0.0
    %161 = vmatpush1.msra.mxu0 %v136
    %162 = vmatprep.subr.mxu0 0.0
    %163 = vmatpush1.msra.mxu0 %v137
    %164 = vmatprep.subr.mxu0 0.0
    %165 = vmatpush1.msra.mxu0 %v138
    %166 = vmatprep.subr.mxu0 0.0
    %167 = vmatpush1.msra.mxu0 %v139
    %168 = vmatprep.subr.mxu0 0.0
    %169 = vmatpush1.msra.mxu0 %v140
    %170 = vmatprep.subr.mxu0 0.0
    %171 = vmatpush1.msra.mxu0 %v141
    %172 = vmatprep.subr.mxu0 0.0
    %173 = vmatpush1.msra.mxu0 %v142
    %174 = vmatprep.subr.mxu0 0.0
    %175 = vmatpush1.msra.mxu0 %v143
    %176 = vmatprep.subr.mxu0 0.0
    %177 = vmatpush1.msra.mxu0 %v144
    %178 = vmatprep.subr.mxu0 0.0
    %179 = vmatpush1.msra.mxu0 %v145
    %180 = vmatprep.subr.mxu0 0.0
    %181 = vmatpush1.msra.mxu0 %v146
    %182 = vmatprep.subr.mxu0 0.0
    %183 = vmatpush1.msra.mxu0 %v147
    %184 = vmatprep.subr.mxu0 0.0
    %185 = vmatpush1.msra.mxu0 %v148
    %186 = vmatprep.subr.mxu0 0.0
    %187 = vmatpush1.msra.mxu0 %v149
    %188 = vmatprep.subr.mxu0 0.0
    %189 = vmatpush1.msra.mxu0 %v150
    %190 = vmatprep.subr.mxu0 0.0
    %191 = vmatpush1.msra.mxu0 0.0
    %192 = vmatprep.subr.mxu0 0.0
    %193 = vmatpush1.msra.mxu0 0.0
    %194 = vmatprep.subr.mxu0 0.0
    %195 = vmatpush1.msra.mxu0 0.0
    %196 = vmatprep.subr.mxu0 0.0
    %197 = vmatpush1.msra.mxu0 0.0
    %198 = vmatprep.subr.mxu0 0.0
    %199 = vmatpush1.msra.mxu0 0.0
    %200 = vmatprep.subr.mxu0 0.0
    %201 = vmatpush1.msra.mxu0 0.0
    %202 = vmatprep.subr.mxu0 0.0
    %203 = vmatpush1.msra.mxu0 0.0
    %204 = vmatprep.subr.mxu0 0.0
    %205 = vmatpush1.msra.mxu0 0.0
    %206 = vmatprep.subr.mxu0 0.0
    %207 = vmatpush1.msra.mxu0 0.0
    %208 = vmatprep.subr.mxu0 0.0
    %209 = vmatpush1.msra.mxu0 0.0
    %210 = vmatprep.subr.mxu0 0.0
    %211 = vmatpush1.msra.mxu0 0.0
    %212 = vmatprep.subr.mxu0 0.0
    %213 = vmatpush1.msra.mxu0 0.0
    %214 = vmatprep.subr.mxu0 0.0
    %215 = vmatpush1.msra.mxu0 0.0
    %216 = vmatprep.subr.mxu0 0.0
    %217 = vmatpush1.msra.mxu0 0.0
    %218 = vmatprep.subr.mxu0 0.0
    %219 = vmatpush1.msra.mxu0 0.0
    %220 = vmatprep.subr.mxu0 0.0
    %221 = vmatpush1.msra.mxu0 0.0
    %222 = vmatprep.mubr.f32.mxu0 0.0
    %223 = vmatmul.mubr.f32.gmra.mrb[0].mxu0 %v133
    %v224 = vpop.f32.mrb[0].mxu0
    %v225 = vadd.f32 %v156, %v224
    %v226 = vpop.f32.mrb[0].mxu0
    %227 = vmatprep.mubr.f32.mxu0 0.0
    %228 = vmatmul.mubr.f32.gmra.mrb[0].mxu0 %v134
    %v229 = vpop.f32.mrb[0].mxu0
    %v230 = vadd.f32 %v156, %v229
    %v231 = vpop.f32.mrb[0].mxu0
    %232 = vdwg.mxu0
    %v233 = vmax.f32 %v225, 0.0
    %v234 = vmax.f32 %v230, 0.0
    %v235 = vld [vmem:[%s5] sm:$0xff]
    %v236 = vld [vmem:[%s5 + $0x8] sm:$0xff]
    %v237 = vld [vmem:[%s5 + $0x10] sm:$0xff]
    %v238 = vld [vmem:[%s5 + $0x18] sm:$0xff]
    %v239 = vld [vmem:[%s5 + $0x20] sm:$0xff]
    %v240 = vld [vmem:[%s5 + $0x28] sm:$0xff]
    %v241 = vld [vmem:[%s5 + $0x30] sm:$0xff]
    %v242 = vld [vmem:[%s5 + $0x38] sm:$0xff]
    %v243 = vld [vmem:[%s5 + $0x40] sm:$0xff]
    %v244 = vld [vmem:[%s5 + $0x48] sm:$0xff]
    %v245 = vld [vmem:[%s5 + $0x50] sm:$0xff]
    %v246 = vld [vmem:[%s5 + $0x58] sm:$0xff]
    %v247 = vld [vmem:[%s5 + $0x60] sm:$0xff]
    %v248 = vld [vmem:[%s5 + $0x68] sm:$0xff]
    %v249 = vld [vmem:[%s5 + $0x70] sm:$0xff]
    %v250 = vld [vmem:[%s5 + $0x78] sm:$0xff]
    %v251 = vld [vmem:[%s6] sm:$0x1]
    %v253 = vlaneseq
    %v254 = vshrl.u32 %v253, 7
    %v255 = vsub.s32 0, %v254
    %v256 = vrot.slane %v251, %v255
    %258 = vmatprep.subr.mxu0 0.0
    %259 = vmatpush1.msra.mxu0 %v235
    %260 = vmatprep.subr.mxu0 0.0
    %261 = vmatpush1.msra.mxu0 %v236
    %262 = vmatprep.subr.mxu0 0.0
    %263 = vmatpush1.msra.mxu0 %v237
    %264 = vmatprep.subr.mxu0 0.0
    %265 = vmatpush1.msra.mxu0 %v238
    %266 = vmatprep.subr.mxu0 0.0
    %267 = vmatpush1.msra.mxu0 %v239
    %268 = vmatprep.subr.mxu0 0.0
    %269 = vmatpush1.msra.mxu0 %v240
    %270 = vmatprep.subr.mxu0 0.0
    %271 = vmatpush1.msra.mxu0 %v241
    %272 = vmatprep.subr.mxu0 0.0
    %273 = vmatpush1.msra.mxu0 %v242
    %274 = vmatprep.subr.mxu0 0.0
    %275 = vmatpush1.msra.mxu0 %v243
    %276 = vmatprep.subr.mxu0 0.0
    %277 = vmatpush1.msra.mxu0 %v244
    %278 = vmatprep.subr.mxu0 0.0
    %279 = vmatpush1.msra.mxu0 %v245
    %280 = vmatprep.subr.mxu0 0.0
    %281 = vmatpush1.msra.mxu0 %v246
    %282 = vmatprep.subr.mxu0 0.0
    %283 = vmatpush1.msra.mxu0 %v247
    %284 = vmatprep.subr.mxu0 0.0
    %285 = vmatpush1.msra.mxu0 %v248
    %286 = vmatprep.subr.mxu0 0.0
    %287 = vmatpush1.msra.mxu0 %v249
    %288 = vmatprep.subr.mxu0 0.0
    %289 = vmatpush1.msra.mxu0 %v250
    %290 = vmatprep.subr.mxu0 0.0
    %291 = vmatpush1.msra.mxu0 0.0
    %292 = vmatprep.subr.mxu0 0.0
    %293 = vmatpush1.msra.mxu0 0.0
    %294 = vmatprep.subr.mxu0 0.0
    %295 = vmatpush1.msra.mxu0 0.0
    %296 = vmatprep.subr.mxu0 0.0
    %297 = vmatpush1.msra.mxu0 0.0
    %298 = vmatprep.subr.mxu0 0.0
    %299 = vmatpush1.msra.mxu0 0.0
    %300 = vmatprep.subr.mxu0 0.0
    %301 = vmatpush1.msra.mxu0 0.0
    %302 = vmatprep.subr.mxu0 0.0
    %303 = vmatpush1.msra.mxu0 0.0
    %304 = vmatprep.subr.mxu0 0.0
    %305 = vmatpush1.msra.mxu0 0.0
    %306 = vmatprep.subr.mxu0 0.0
    %307 = vmatpush1.msra.mxu0 0.0
    %308 = vmatprep.subr.mxu0 0.0
    %309 = vmatpush1.msra.mxu0 0.0
    %310 = vmatprep.subr.mxu0 0.0
    %311 = vmatpush1.msra.mxu0 0.0
    %312 = vmatprep.subr.mxu0 0.0
    %313 = vmatpush1.msra.mxu0 0.0
    %314 = vmatprep.subr.mxu0 0.0
    %315 = vmatpush1.msra.mxu0 0.0
    %316 = vmatprep.subr.mxu0 0.0
    %317 = vmatpush1.msra.mxu0 0.0
    %318 = vmatprep.subr.mxu0 0.0
    %319 = vmatpush1.msra.mxu0 0.0
    %320 = vmatprep.subr.mxu0 0.0
    %321 = vmatpush1.msra.mxu0 0.0
    %322 = vmatprep.mubr.f32.mxu0 0.0
    %323 = vmatmul.mubr.f32.gmra.mrb[0].mxu0 %v233
    %v324 = vpop.f32.mrb[0].mxu0
    %v325 = vadd.f32 %v256, %v324
    %v326 = vpop.f32.mrb[0].mxu0
    %327 = vmatprep.mubr.f32.mxu0 0.0
    %328 = vmatmul.mubr.f32.gmra.mrb[0].mxu0 %v234
    %v329 = vpop.f32.mrb[0].mxu0
    %v330 = vadd.f32 %v256, %v329
    %v331 = vpop.f32.mrb[0].mxu0
    %332 = vdwg.mxu0
    %vm333 = vcmask 64512
    %334 = vst.msk [vmem:[%s7] sm:$0xff] %vm333, %v325
    %335 = vst.msk [vmem:[%s7 + $0x8] sm:$0xff] %vm333, %v330
    // Predicated region
    $region34: #{tpu_custom_call.1} parent=1 // pred_check
      _
    $region35: #{tpu_custom_call.1} parent=1 // pred_check_branch
      %337 = sbr.rel (0) target = $region37
    $region36: #{tpu_custom_call.1} parent=1 // pred_region
      _
    $region37: #{tpu_custom_call.1} parent=1 // pred_fallthru
      _
    // Predicated region
    $region38: #{tpu_custom_call.1} parent=1 // pred_check
      _
    $region39: #{tpu_custom_call.1} parent=1 // pred_check_branch
      %339 = sbr.rel (0) target = $region41
    $region40: #{tpu_custom_call.1} parent=1 // pred_region
      _
    $region41: #{tpu_custom_call.1} parent=1 // pred_fallthru
      _
    %340 = vsyncpa [#allocation3], 1

</llo_original>
